<compile_context>
chip_gen: v7x
topology: tpu7x:2x2x1
jax: 0.10.0
libtpu: 0.0.40
codegen_flags: <defaults>
</compile_context>

<pallas_src>
import jax
import jax.numpy as jnp
from jax.experimental import pallas as pl
from jax.experimental.pallas import tpu as pltpu


# ----------------------------------------------------------------------------
# Kernel: out[b, s, :] = x[b, s, :] + pos[s, :]   (pos broadcast over batch)
# ----------------------------------------------------------------------------
def _pos_add_kernel(x_ref, pos_ref, o_ref):
    # x_ref/o_ref: (B, tile_s, d); pos_ref: (tile_s, d) -> broadcasts over B.
    o_ref[...] = x_ref[...] + pos_ref[...]


def _choose_tile_s(S, row_elems, dtype_bytes=4, vmem_budget=2 << 20, max_tile=2048):
    """Largest multiple-of-8 S-tile that divides S and fits the VMEM budget.

    Falls back to the full extent (always legal: full-dim blocks satisfy the
    (8,128) constraint) when S is not a multiple of 8 or no divisor is found.
    """
    if S % 8 != 0:
        return S
    cap = min(S, max_tile, max(8, vmem_budget // max(1, row_elems * dtype_bytes)))
    cap -= cap % 8
    cap = max(cap, 8)
    for t in range(cap, 7, -8):
        if S % t == 0:
            return t
    return S


def position_embedding_selectors(x, time_embed_weight):
    """Pallas equivalent of PositionEmbeddingSelectors.forward.

    Args:
      x: (B, S, d) batch of selectors.
      time_embed_weight: (max_pos, d) learnable embedding table, S <= max_pos.
    Returns:
      (B, S, d) tensor equal to x + time_embed_weight[:S] (broadcast over B).
    """
    B, S, d = x.shape
    max_pos, d_e = time_embed_weight.shape
    assert d == d_e, (d, d_e)
    assert S <= max_pos, (S, max_pos)

    # time_embed(arange(S)) == first S rows of the table (contiguous slice).
    pos = jax.lax.slice(time_embed_weight, (0, 0), (S, d))

    tile_s = _choose_tile_s(S, row_elems=B * d, dtype_bytes=x.dtype.itemsize)
    grid = (pl.cdiv(S, tile_s),)

    return pl.pallas_call(
        _pos_add_kernel,
        out_shape=jax.ShapeDtypeStruct((B, S, d), x.dtype),
        grid=grid,
        in_specs=[
            pl.BlockSpec((B, tile_s, d), lambda s: (0, s, 0)),  # x tile
            pl.BlockSpec((tile_s, d), lambda s: (s, 0)),        # pos tile (shared)
        ],
        out_specs=pl.BlockSpec((B, tile_s, d), lambda s: (0, s, 0)),
        compiler_params=pltpu.CompilerParams(
            dimension_semantics=("parallel",),
        ),
    )(x, pos)


if __name__ == "__main__":
    key = jax.random.PRNGKey(0)
    k_x, k_w, k_x2, k_w2 = jax.random.split(key, 4)

    # Small shapes implied by the module: batch=2, max_pos (seq)=8, n_embd=32.
    B, max_pos, d = 2, 8, 32
    x = jax.random.normal(k_x, (B, max_pos, d), jnp.float32)
    # reset_parameters(): torch.nn.init.uniform_(time_embed.weight)
    w = jax.random.uniform(k_w, (max_pos, d), dtype=jnp.float32)

    out = position_embedding_selectors(x, w)
    jax.block_until_ready(out)
    assert out.shape == (B, max_pos, d), out.shape
    ref = x + w[None, :max_pos, :]
    assert jnp.allclose(out, ref, atol=1e-6, rtol=1e-6)

    # Larger case exercising the tiled grid (multiple S blocks, batch folded
    # into each block, lane-dense d=128 output).
    B2, max_pos2, S2, d2 = 2, 4096, 4096, 128
    x2 = jax.random.normal(k_x2, (B2, S2, d2), jnp.float32)
    w2 = jax.random.uniform(k_w2, (max_pos2, d2), dtype=jnp.float32)
    out2 = position_embedding_selectors(x2, w2)
    jax.block_until_ready(out2)
    ref2 = x2 + w2[None, :S2, :]
    assert jnp.allclose(out2, ref2, atol=1e-6, rtol=1e-6)

    print("KERNEL_OK")
</pallas_src>

<mosaic_0001>
module attributes {stable_mosaic.version = 11 : i64} {
  func.func @_pos_add_kernel(%arg0: i32, %arg1: memref<2x8x32xf32, #tpu.memory_space<vmem>>, %arg2: memref<8x32xf32, #tpu.memory_space<vmem>>, %arg3: memref<2x8x32xf32, #tpu.memory_space<vmem>>) attributes {dimension_semantics = [#tpu.dimension_semantics<parallel>], iteration_bounds = array<i64: 1>, scalar_prefetch = 0 : i64, scratch_operands = 0 : i64, tpu.core_type = #tpu.core_type<tc>, window_params = [{transform_indices = @transform_0, window_bounds = array<i64: 2, 8, 32>}, {transform_indices = @transform_1, window_bounds = array<i64: 8, 32>}, {transform_indices = @transform_2, window_bounds = array<i64: 2, 8, 32>}]} {
    %c0 = arith.constant 0 : index
    %c0_0 = arith.constant 0 : index
    %c0_1 = arith.constant 0 : index
    %0 = vector.load %arg1[%c0, %c0_0, %c0_1] : memref<2x8x32xf32, #tpu.memory_space<vmem>>, vector<2x8x32xf32>
    %c0_2 = arith.constant 0 : index
    %c0_3 = arith.constant 0 : index
    %1 = vector.load %arg2[%c0_2, %c0_3] : memref<8x32xf32, #tpu.memory_space<vmem>>, vector<8x32xf32>
    %2 = vector.shape_cast %1 : vector<8x32xf32> to vector<1x8x32xf32>
    %3 = vector.broadcast %2 : vector<1x8x32xf32> to vector<2x8x32xf32>
    %4 = arith.addf %0, %3 : vector<2x8x32xf32>
    %c0_4 = arith.constant 0 : index
    %c0_5 = arith.constant 0 : index
    %c0_6 = arith.constant 0 : index
    %5 = vector.load %arg3[%c0_4, %c0_5, %c0_6] : memref<2x8x32xf32, #tpu.memory_space<vmem>>, vector<2x8x32xf32>
    tpu.vector_store %arg3[%c0_4, %c0_5, %c0_6], %4 {strides = array<i32>} : memref<2x8x32xf32, #tpu.memory_space<vmem>>, vector<2x8x32xf32>,
    return
  }
  func.func @transform_0(%arg0: i32) -> (i32, i32, i32) {
    %c0_i32 = arith.constant 0 : i32
    %c0_i32_0 = arith.constant 0 : i32
    %c0_i32_1 = arith.constant 0 : i32
    return %c0_i32, %arg0, %c0_i32_0 : i32, i32, i32
  }
  func.func @transform_1(%arg0: i32) -> (i32, i32) {
    %c0_i32 = arith.constant 0 : i32
    %c0_i32_0 = arith.constant 0 : i32
    return %arg0, %c0_i32 : i32, i32
  }
  func.func @transform_2(%arg0: i32) -> (i32, i32, i32) {
    %c0_i32 = arith.constant 0 : i32
    %c0_i32_0 = arith.constant 0 : i32
    %c0_i32_1 = arith.constant 0 : i32
    return %c0_i32, %arg0, %c0_i32_0 : i32, i32, i32
  }
}

</mosaic_0001>

<llo_original>
// kernel: tpu_custom_call.1
$region0: #{tpu_custom_call.1}
  #allocation0 [shape = 'u32[]', space=smem, size = 0x4, offset = 0x4, fixed_abs, tag = 'smem constant byte address 0x4 - core index']
  #allocation1 [shape = 'u32[144,128]{1,0:T(1,128)}', space=vmem, size = 0x12000, scoped, tag = 'internal scratch']
  %s0 = inlined_call_operand.hbm [shape: f32[2,8,32], index: 0, kind: input, shape index: {}]
  %s1 = inlined_call_operand.hbm [shape: f32[8,32], index: 1, kind: input, shape index: {}]
  %s2 = inlined_call_operand.hbm [shape: f32[2,8,32], index: 2, kind: output, shape index: {}]
  %s3 = sld [smem:[#allocation0]]
  $region26: #{tpu_custom_call.1} parent=0
    _
  %s5 = ssub.s32 1, %s3
  %s6 = scalar_select 0, %s5, %s3
  $region1: #{tpu_custom_call.1} parent=0
    #allocation2 [shape = 'u8[8192]{0}', space=vmem, size = 0x2000, scoped, tag = 'input window, operand 0, single buffered']
    #allocation3 [shape = 's32[1]{0}', space=sflag, size = 0x4, scoped, tag = 'scoped memory for tpu_custom_call.1']
    #allocation4 [shape = 's32[1]{0}', space=sflag, size = 0x4, scoped, tag = 'scoped memory for tpu_custom_call.1']
    #allocation5 [shape = 'u8[4096]{0}', space=vmem, size = 0x1000, scoped, tag = 'input window, operand 1, single buffered']
    #allocation6 [shape = 's32[1]{0}', space=sflag, size = 0x4, scoped, tag = 'scoped memory for tpu_custom_call.1']
    #allocation7 [shape = 'u8[8192]{0}', space=vmem, size = 0x2000, scoped, tag = 'output window, operand 0, single buffered']
    %7 = vsyncpa [#allocation3], 0
    %8 = vsyncpa [#allocation6], 0
    %9 = vsyncpa [#allocation4], 0
    // Predicated region
    $region2: #{tpu_custom_call.1} parent=1 // pred_check
      _
    $region3: #{tpu_custom_call.1} parent=1 // pred_check_branch
      %11 = sbr.rel (0) target = $region5
    $region4: #{tpu_custom_call.1} parent=1 // pred_region
      %s13 = ssub.s32 256, 256
      %14 = vsyncadd [#allocation3], %s13
      %s15 = sshll.u32 [#allocation2], 4
      %s16 = int_to_ptr.vmem [resolvable:$true] %s15
      %21 = dma.hbm_to_vmem [thread:$0]  %s0, 256, %s16, [#allocation3], 128, 128, 8
    $region5: #{tpu_custom_call.1} parent=1 // pred_fallthru
      _
    // Predicated region
    $region6: #{tpu_custom_call.1} parent=1 // pred_check
      _
    $region7: #{tpu_custom_call.1} parent=1 // pred_check_branch
      %23 = sbr.rel (0) target = $region9
    $region8: #{tpu_custom_call.1} parent=1 // pred_region
      %s25 = ssub.s32 128, 128
      %26 = vsyncadd [#allocation6], %s25
      %s28 = sshll.u32 [#allocation5], 4
      %s29 = int_to_ptr.vmem [resolvable:$true] %s28
      %31 = dma.hbm_to_vmem [thread:$0]  %s1, 128, %s29, [#allocation6]
    $region9: #{tpu_custom_call.1} parent=1 // pred_fallthru
      _
    // Predicated region
    $region10: #{tpu_custom_call.1} parent=1 // pred_check
      _
    $region11: #{tpu_custom_call.1} parent=1 // pred_check_branch
      %33 = sbr.rel (0) target = $region13
    $region12: #{tpu_custom_call.1} parent=1 // pred_region
      %34 = dma.done [#allocation3], 256
    $region13: #{tpu_custom_call.1} parent=1 // pred_fallthru
      _
    // Predicated region
    $region14: #{tpu_custom_call.1} parent=1 // pred_check
      _
    $region15: #{tpu_custom_call.1} parent=1 // pred_check_branch
      %36 = sbr.rel (0) target = $region17
    $region16: #{tpu_custom_call.1} parent=1 // pred_region
      %37 = dma.done [#allocation6], 128
    $region17: #{tpu_custom_call.1} parent=1 // pred_fallthru
      _
    %v38 = vld [vmem:[#allocation2] sm:$0xff]
    %v39 = vld [vmem:[#allocation2 + $0x8] sm:$0xff]
    %v40 = vld [vmem:[#allocation5] sm:$0xff]
    %v41 = vadd.f32 %v38, %v40
    %v42 = vadd.f32 %v39, %v40
    %vm43 = vcmask 261120
    %44 = vst.msk [vmem:[#allocation7] sm:$0xff] %vm43, %v41
    %45 = vst.msk [vmem:[#allocation7 + $0x8] sm:$0xff] %vm43, %v42
    // Predicated region
    $region18: #{tpu_custom_call.1} parent=1 // pred_check
      _
    $region19: #{tpu_custom_call.1} parent=1 // pred_check_branch
      %47 = sbr.rel (0) target = $region21
    $region20: #{tpu_custom_call.1} parent=1 // pred_region
      %s49 = ssub.s32 256, 256
      %50 = vsyncadd [#allocation4], %s49
      %s51 = sshll.u32 [#allocation7], 4
      %s52 = int_to_ptr.vmem [resolvable:$true] %s51
      %57 = dma.vmem_to_hbm [thread:$0]  %s52, 256, %s2, [#allocation4], 128, 128, 8
    $region21: #{tpu_custom_call.1} parent=1 // pred_fallthru
      _
    // Predicated region
    $region22: #{tpu_custom_call.1} parent=1 // pred_check
      _
    $region23: #{tpu_custom_call.1} parent=1 // pred_check_branch
      %59 = sbr.rel (0) target = $region25
    $region24: #{tpu_custom_call.1} parent=1 // pred_region
      %60 = dma.done [#allocation4], 256
    $region25: #{tpu_custom_call.1} parent=1 // pred_fallthru
      _
    %61 = vsyncpa [#allocation3], 1
    %62 = vsyncpa [#allocation6], 1
    %63 = vsyncpa [#allocation4], 1

</llo_original>
